<compile_context>
chip_gen: v6e
topology: v6e:2x2x1
jax: 0.10.0
libtpu: 0.0.40
codegen_flags: <defaults>
</compile_context>

<pallas_src>
import functools

import jax
import jax.numpy as jnp
import numpy as np
from jax import lax
from jax.experimental import pallas as pl
from jax.experimental.pallas import tpu as pltpu

DILATION = 2      # conv2 dilation == padding (module sets padding = dilation)
ALPHA = 8.3       # depth similarity F_D = exp(-ALPHA * |dD|)
BN_EPS = 1e-5
EXPANSION = 4


# ---------------------------------------------------------------------------
# One-time host-side probe of the pltpu.roll sign convention (kept OUT of the
# hot kernel; replaces the per-step runtime probe + 9 full-tile selects).
# Returns sign such that  pltpu.roll(v, (sign*off) % n, axis=-1)[p] == v[(p+off) % n].
# ---------------------------------------------------------------------------
def _roll_probe_kernel(x_ref, o_ref):
    o_ref[...] = pltpu.roll(x_ref[...], 1, axis=1)


@functools.cache
def _roll_sign() -> int:
    with jax.ensure_compile_time_eval():
        x = jnp.arange(8 * 128, dtype=jnp.float32).reshape(8, 128)
        y = pl.pallas_call(
            _roll_probe_kernel,
            out_shape=jax.ShapeDtypeStruct((8, 128), jnp.float32),
        )(x)
        if bool(jnp.array_equal(y, jnp.roll(x, 1, axis=1))):
            return -1       # pltpu.roll matches jnp.roll: result[p] = x[p - shift]
        if bool(jnp.array_equal(y, jnp.roll(x, -1, axis=1))):
            return 1        # reverse convention: result[p] = x[p + shift]
    raise AssertionError("unexpected pltpu.roll semantics")


# ---------------------------------------------------------------------------
# Kernel factory
# ---------------------------------------------------------------------------
def _make_kernel(shifts, alpha, fuse):
    """shifts: 9 static lane-roll amounts (tap order kh*3+kw), already sign-adjusted."""

    def kernel(x_ref, d_ref, m_ref, w1_ref, b1_ref, w2_ref, b2_ref,
               w3_ref, b3_ref, out_ref):
        x = x_ref[0]                                   # (cin, HWp) f32, lane-dense
        d = d_ref[0]                                   # (1,  HWp) f32

        # ---- conv1 (1x1) + folded bn1 + relu -> (planes, HWp) ----
        h1 = jnp.dot(w1_ref[...], x.astype(jnp.bfloat16),
                     preferred_element_type=jnp.float32)
        h1 = jnp.maximum(h1 + b1_ref[...], 0.0)

        # ---- depth similarity for all 9 taps in one batched exp ----
        d_sh = [d if s == 0 else pltpu.roll(d, s, axis=1) for s in shifts]
        d9 = jnp.concatenate(d_sh, axis=0)             # (9, HWp)
        fd9 = jnp.exp(-alpha * jnp.abs(d - d9)) * m_ref[...]   # masked, f32

        def tap(t):
            s = shifts[t]
            h1s = h1 if s == 0 else pltpu.roll(h1, s, axis=1)
            return h1s * fd9[t:t + 1, :]               # (planes, HWp) f32

        # ---- depth-aware 3x3 conv (dilation=d, padding=d, stride=1) ----
        if fuse:
            # Small K: one fused im2col matmul, K = 9*planes.
            im2col = jnp.concatenate([tap(t) for t in range(9)], axis=0)
            h2 = jnp.dot(w2_ref[...], im2col.astype(jnp.bfloat16),
                         preferred_element_type=jnp.float32)
        else:
            # Large K: 9 per-tap accumulating matmuls (bounded peak VMEM).
            h2 = jnp.zeros_like(h1)
            for t in range(9):
                h2 = h2 + jnp.dot(w2_ref[t], tap(t).astype(jnp.bfloat16),
                                  preferred_element_type=jnp.float32)
        h2 = jnp.maximum(h2 + b2_ref[...], 0.0)

        # ---- conv3 (1x1) + folded bn3 ----
        h3 = jnp.dot(w3_ref[...], h2.astype(jnp.bfloat16),
                     preferred_element_type=jnp.float32) + b3_ref[...]

        # ---- identity residual + relu, lane-dense store ----
        out_ref[0] = jnp.maximum(h3 + x, 0.0).astype(out_ref.dtype)

    return kernel


# ---------------------------------------------------------------------------
# Host-side helpers
# ---------------------------------------------------------------------------
def _fold_bn(w2d, bn, eps=BN_EPS):
    """Fold eval-mode BatchNorm into a 2-D conv weight + per-channel bias."""
    gamma, beta, mean, var = bn
    scale = gamma / jnp.sqrt(var + eps)
    wf = (w2d * scale[:, None]).astype(jnp.float32)
    bf = ((beta - mean * scale)[:, None]).astype(jnp.float32)   # (Cout, 1)
    return wf, bf


def _edge_masks(H, W, HWp, dilation):
    """(9, HWp) float {0,1}: tap validity per flat-HW position (pad cols = 0)."""
    HW = H * W
    idx = np.arange(HWp)
    hh, ww = idx // W, idx % W
    in_img = idx < HW
    rows = []
    for kh in range(3):
        for kw in range(3):
            dh, dw = (kh - 1) * dilation, (kw - 1) * dilation
            rows.append(in_img & (hh + dh >= 0) & (hh + dh < H)
                        & (ww + dw >= 0) & (ww + dw < W))
    return jnp.asarray(np.stack(rows).astype(np.float32))       # (9, HWp)


def depthconv_bottleneck(x, depth, params, *, dilation=DILATION, alpha=ALPHA):
    """x: (N, inplanes, H, W), depth: (N, 1, H, W) -> (N, 4*planes, H, W)."""
    conv1_w, bn1, conv2_w, bn2, conv3_w, bn3 = params
    N, cin, H, W = x.shape
    planes = conv1_w.shape[0]
    cout = conv3_w.shape[0]
    assert cout == cin, "identity residual requires inplanes == 4*planes"
    HW = H * W
    HWp = ((HW + 127) // 128) * 128                   # lane-dense padding
    pad = HWp - HW

    # Fold BN host-side; weights go to bf16 (MXU), biases stay f32.
    w1f, b1f = _fold_bn(conv1_w.reshape(planes, cin), bn1)
    w2_2d = jnp.transpose(conv2_w, (0, 2, 3, 1)).reshape(planes, 9 * planes)
    w2f, b2f = _fold_bn(w2_2d, bn2)
    w3f, b3f = _fold_bn(conv3_w.reshape(cout, planes), bn3)

    fuse = (9 * planes) <= 256
    if fuse:
        w2in = w2f.astype(jnp.bfloat16)                                 # (planes, 9*planes)
        w2_spec = pl.BlockSpec((planes, 9 * planes), lambda n: (0, 0))
    else:
        w2in = (w2f.reshape(planes, 9, planes)
                    .transpose(1, 0, 2).astype(jnp.bfloat16))           # (9, planes, planes)
        w2_spec = pl.BlockSpec((9, planes, planes), lambda n: (0, 0, 0))

    # NCHW kept end-to-end; only free reshapes + lane padding on the host.
    xf = jnp.pad(x.reshape(N, cin, HW).astype(jnp.float32),
                 ((0, 0), (0, 0), (0, pad)))
    df = jnp.pad(depth.reshape(N, 1, HW).astype(jnp.float32),
                 ((0, 0), (0, 0), (0, pad)))
    mask9 = _edge_masks(H, W, HWp, dilation)

    # Static tap offsets -> static lane-roll amounts (sign resolved once).
    offs = [(kh - 1) * dilation * W + (kw - 1) * dilation
            for kh in range(3) for kw in range(3)]
    sign = _roll_sign()
    shifts = tuple((sign * o) % HWp for o in offs)

    kernel = _make_kernel(shifts, alpha, fuse)

    out = pl.pallas_call(
        kernel,
        out_shape=jax.ShapeDtypeStruct((N, cout, HWp), jnp.float32),
        grid=(N,),
        in_specs=[
            pl.BlockSpec((1, cin, HWp), lambda n: (n, 0, 0)),
            pl.BlockSpec((1, 1, HWp), lambda n: (n, 0, 0)),
            pl.BlockSpec((9, HWp), lambda n: (0, 0)),
            pl.BlockSpec((planes, cin), lambda n: (0, 0)),
            pl.BlockSpec((planes, 1), lambda n: (0, 0)),
            w2_spec,
            pl.BlockSpec((planes, 1), lambda n: (0, 0)),
            pl.BlockSpec((cout, planes), lambda n: (0, 0)),
            pl.BlockSpec((cout, 1), lambda n: (0, 0)),
        ],
        out_specs=pl.BlockSpec((1, cout, HWp), lambda n: (n, 0, 0)),
        compiler_params=pltpu.CompilerParams(
            dimension_semantics=("parallel",)),        # v7x: batch over 2 TCs
    )(xf, df, mask9, w1f.astype(jnp.bfloat16), b1f, w2in, b2f,
      w3f.astype(jnp.bfloat16), b3f)

    return out[:, :, :HW].reshape(N, cout, H, W)


# ---------------------------------------------------------------------------
# Synthetic parameters + pure-JAX reference (eval-mode PyTorch semantics)
# ---------------------------------------------------------------------------
def make_params(key, inplanes, planes):
    """Deterministic synthetic parameters in PyTorch layouts (OIHW, eval BN)."""
    cout = planes * EXPANSION
    ks = jax.random.split(key, 6)
    s = 0.1

    def bn_params(k, c):
        k1, k2, k3, k4 = jax.random.split(k, 4)
        gamma = 1.0 + s * jax.random.normal(k1, (c,), jnp.float32)
        beta = s * jax.random.normal(k2, (c,), jnp.float32)
        mean = s * jax.random.normal(k3, (c,), jnp.float32)
        var = jax.random.uniform(k4, (c,), jnp.float32, 0.5, 1.5)
        return (gamma, beta, mean, var)

    conv1_w = s * jax.random.normal(ks[0], (planes, inplanes, 1, 1), jnp.float32)
    conv2_w = s * jax.random.normal(ks[1], (planes, planes, 3, 3), jnp.float32)
    conv3_w = s * jax.random.normal(ks[2], (cout, planes, 1, 1), jnp.float32)
    return (conv1_w, bn_params(ks[3], planes),
            conv2_w, bn_params(ks[4], planes),
            conv3_w, bn_params(ks[5], cout))


def ref_forward(x, depth, params, *, dilation=DILATION, alpha=ALPHA, eps=BN_EPS):
    """Pure-JAX NCHW reference mirroring the PyTorch module (eval mode)."""
    conv1_w, bn1, conv2_w, bn2, conv3_w, bn3 = params
    x = x.astype(jnp.float32)
    depth = depth.astype(jnp.float32)
    prec = lax.Precision.HIGHEST
    N, cin, H, W = x.shape
    planes = conv1_w.shape[0]
    cout = conv3_w.shape[0]

    def bn(y, p):
        g, b, m, v = p
        inv = g / jnp.sqrt(v + eps)
        return (y - m[None, :, None, None]) * inv[None, :, None, None] \
            + b[None, :, None, None]

    h = jnp.einsum('nchw,oc->nohw', x, conv1_w.reshape(planes, cin),
                   precision=prec)
    h = jax.nn.relu(bn(h, bn1))

    p = dilation  # padding == dilation
    hpad = jnp.pad(h, ((0, 0), (0, 0), (p, p), (p, p)))
    dpad = jnp.pad(depth, ((0, 0), (0, 0), (p, p), (p, p)))
    acc = jnp.zeros((N, planes, H, W), jnp.float32)
    for kh in range(3):
        for kw in range(3):
            xs = hpad[:, :, kh * dilation:kh * dilation + H,
                      kw * dilation:kw * dilation + W]
            ds = dpad[:, :, kh * dilation:kh * dilation + H,
                      kw * dilation:kw * dilation + W]
            fd = jnp.exp(-alpha * jnp.abs(depth - ds))
            acc = acc + jnp.einsum('nchw,oc->nohw', xs * fd,
                                   conv2_w[:, :, kh, kw], precision=prec)
    h = jax.nn.relu(bn(acc, bn2))

    h = jnp.einsum('nchw,oc->nohw', h, conv3_w.reshape(cout, planes),
                   precision=prec)
    h = bn(h, bn3)
    return jax.nn.relu(h + x)


if __name__ == "__main__":
    # Small test config: inplanes == 4*planes so the identity residual applies.
    N, inplanes, planes, H, W = 2, 32, 8, 16, 16

    key = jax.random.PRNGKey(0)
    kx, kd, kp = jax.random.split(key, 3)
    x = jax.random.normal(kx, (N, inplanes, H, W), jnp.float32)
    depth = jax.random.uniform(kd, (N, 1, H, W), jnp.float32, 0.0, 2.0)
    params = make_params(kp, inplanes, planes)

    _roll_sign()   # populate the cached roll-convention probe eagerly (outside jit)

    run = jax.jit(lambda a, b, c: depthconv_bottleneck(a, b, c))
    out = jax.block_until_ready(run(x, depth, params))

    out_ref = ref_forward(x, depth, params)
    assert out.shape == (N, planes * EXPANSION, H, W)
    # bf16 MXU operands vs HIGHEST-precision f32 reference -> looser tolerance.
    assert jnp.allclose(out, out_ref, rtol=2e-2, atol=2e-2), "output mismatch"

    print("KERNEL_OK")
</pallas_src>

<mosaic_0001>
module attributes {stable_mosaic.version = 11 : i64} {
  func.func @_roll_probe_kernel(%arg0: memref<8x128xf32, #tpu.memory_space<vmem>>, %arg1: memref<8x128xf32, #tpu.memory_space<vmem>>) attributes {dimension_semantics = [], scalar_prefetch = 0 : i64, scratch_operands = 0 : i64, tpu.core_type = #tpu.core_type<tc>} {
    %c0 = arith.constant 0 : index
    %c0_0 = arith.constant 0 : index
    %0 = vector.load %arg0[%c0, %c0_0] : memref<8x128xf32, #tpu.memory_space<vmem>>, vector<8x128xf32>
    %c1_i32 = arith.constant 1 : i32
    %1 = tpu.dynamic_rotate %0 by %c1_i32 dim 1 : vector<8x128xf32>, i32 -> vector<8x128xf32>
    %c0_1 = arith.constant 0 : index
    %c0_2 = arith.constant 0 : index
    %2 = vector.load %arg1[%c0_1, %c0_2] : memref<8x128xf32, #tpu.memory_space<vmem>>, vector<8x128xf32>
    tpu.vector_store %arg1[%c0_1, %c0_2], %1 {strides = array<i32>} : memref<8x128xf32, #tpu.memory_space<vmem>>, vector<8x128xf32>,
    return
  }
}

</mosaic_0001>

<llo_original>
// kernel: tpu_custom_call.1
$region0: #{tpu_custom_call.1}
  #allocation0 [shape = 'u32[]', space=smem, size = 0x4, offset = 0x4, fixed_abs, tag = 'smem constant byte address 0x4 - core index']
  #allocation1 [shape = 'u32[144,128]{1,0:T(1,128)}', space=vmem, size = 0x12000, scoped, tag = 'internal scratch']
  %s0 = inlined_call_operand.hbm [shape: f32[8,128], index: 0, kind: input, shape index: {}]
  %s1 = inlined_call_operand.hbm [shape: f32[8,128], index: 1, kind: output, shape index: {}]
  %s2 = sld [smem:[#allocation0]]
  $region18: #{tpu_custom_call.1} parent=0
    _
  %s4 = ssub.s32 1, %s2
  %s5 = scalar_select 0, %s4, %s2
  $region1: #{tpu_custom_call.1} parent=0
    #allocation2 [shape = 'u8[4096]{0}', space=vmem, size = 0x1000, scoped, tag = 'input window, operand 0, single buffered']
    #allocation3 [shape = 's32[1]{0}', space=sflag, size = 0x4, scoped, tag = 'scoped memory for tpu_custom_call.1']
    #allocation4 [shape = 's32[1]{0}', space=sflag, size = 0x4, scoped, tag = 'scoped memory for tpu_custom_call.1']
    #allocation5 [shape = 'u8[4096]{0}', space=vmem, size = 0x1000, scoped, tag = 'output window, operand 0, single buffered']
    %6 = vsyncpa [#allocation3], 0
    %7 = vsyncpa [#allocation4], 0
    // Predicated region
    $region2: #{tpu_custom_call.1} parent=1 // pred_check
      _
    $region3: #{tpu_custom_call.1} parent=1 // pred_check_branch
      %9 = sbr.rel (0) target = $region5
    $region4: #{tpu_custom_call.1} parent=1 // pred_region
      %s11 = ssub.s32 128, 128
      %12 = vsyncadd [#allocation3], %s11
      %s14 = sshll.u32 [#allocation2], 4
      %s15 = int_to_ptr.vmem [resolvable:$true] %s14
      %17 = dma.hbm_to_vmem [thread:$0]  %s0, 128, %s15, [#allocation3]
    $region5: #{tpu_custom_call.1} parent=1 // pred_fallthru
      _
    // Predicated region
    $region6: #{tpu_custom_call.1} parent=1 // pred_check
      _
    $region7: #{tpu_custom_call.1} parent=1 // pred_check_branch
      %19 = sbr.rel (0) target = $region9
    $region8: #{tpu_custom_call.1} parent=1 // pred_region
      %20 = dma.done [#allocation3], 128
    $region9: #{tpu_custom_call.1} parent=1 // pred_fallthru
      _
    %v21 = vld [vmem:[#allocation2] sm:$0xff]
    %22 = vrot.lane.b32.xlu0 %v21, 1
    %v23 = vpop.permute.xlu0 %22
    %24 = vst [vmem:[#allocation5] sm:$0xff] %v23
    // Predicated region
    $region10: #{tpu_custom_call.1} parent=1 // pred_check
      _
    $region11: #{tpu_custom_call.1} parent=1 // pred_check_branch
      %26 = sbr.rel (0) target = $region13
    $region12: #{tpu_custom_call.1} parent=1 // pred_region
      %s28 = ssub.s32 128, 128
      %29 = vsyncadd [#allocation4], %s28
      %s31 = sshll.u32 [#allocation5], 4
      %s32 = int_to_ptr.vmem [resolvable:$true] %s31
      %34 = dma.vmem_to_hbm [thread:$0]  %s32, 128, %s1, [#allocation4]
    $region13: #{tpu_custom_call.1} parent=1 // pred_fallthru
      _
    // Predicated region
    $region14: #{tpu_custom_call.1} parent=1 // pred_check
      _
    $region15: #{tpu_custom_call.1} parent=1 // pred_check_branch
      %36 = sbr.rel (0) target = $region17
    $region16: #{tpu_custom_call.1} parent=1 // pred_region
      %37 = dma.done [#allocation4], 128
    $region17: #{tpu_custom_call.1} parent=1 // pred_fallthru
      _
    %38 = vsyncpa [#allocation3], 1
    %39 = vsyncpa [#allocation4], 1

</llo_original>
